<compile_context>
chip_gen: v5e
topology: v5e:2x2
jax: 0.10.0
libtpu: 0.0.40
codegen_flags: <defaults>
</compile_context>

<pallas_src>
import functools

import jax
import jax.numpy as jnp
from jax import lax
from jax.experimental import pallas as pl
from jax.experimental.pallas import tpu as pltpu


def _hash_u32(x):
    """lowbias32-style integer mix; portable (plain jnp uint32 ops only)."""
    x = x ^ (x >> 16)
    x = x * jnp.uint32(0x7FEB352D)
    x = x ^ (x >> 15)
    x = x * jnp.uint32(0x846CA68B)
    x = x ^ (x >> 16)
    return x


def _graph_constructor_kernel(idx_ref, emb1_ref, emb2_ref,
                              w1_ref, b1_ref, w2_ref, b2_ref, out_ref,
                              *, alpha, k, num_nodes, seed):
    n = out_ref.shape[0]

    # ---- fused embedding-row gather: one-hot matmul on the MXU (exact 0/1) ----
    idx = idx_ref[...]                                          # (n, 1) int32
    node_iota = lax.broadcasted_iota(jnp.int32, (n, num_nodes), 1)
    onehot = (idx == node_iota).astype(jnp.float32)             # (n, num_nodes)
    e1 = jnp.dot(onehot, emb1_ref[...], preferred_element_type=jnp.float32)
    e2 = jnp.dot(onehot, emb2_ref[...], preferred_element_type=jnp.float32)

    # ---- nodevec = tanh(alpha * (e @ W.T + b)); contract on dim 1, no .T ----
    dn = (((1,), (1,)), ((), ()))                               # contract last dims
    v1 = jnp.tanh(alpha * (lax.dot_general(e1, w1_ref[...], dn,
                                           preferred_element_type=jnp.float32)
                           + b1_ref[...]))
    v2 = jnp.tanh(alpha * (lax.dot_general(e2, w2_ref[...], dn,
                                           preferred_element_type=jnp.float32)
                           + b2_ref[...]))

    # ---- a = v1 v2^T - v2 v1^T = m - m^T : one MXU matmul + one XLU transpose ----
    m = lax.dot_general(v1, v2, dn, preferred_element_type=jnp.float32)
    a = m - m.T
    adj = jnp.maximum(jnp.tanh(alpha * a), 0.0)                 # relu(tanh(alpha*a))

    # ---- in-kernel uniform [0,1) noise (torch.rand_like equivalent) ----------
    # Counter-based hash PRNG: portable across TPU Mosaic and interpret mode.
    row = lax.broadcasted_iota(jnp.int32, (n, n), 0)
    col = lax.broadcasted_iota(jnp.int32, (n, n), 1)
    counter = (row * n + col).astype(jnp.uint32)
    counter = counter ^ jnp.uint32((seed * 0x9E3779B9 + 0x85EBCA6B) & 0xFFFFFFFF)
    bits = _hash_u32(counter)
    unif = (bits >> 8).astype(jnp.int32).astype(jnp.float32) * (1.0 / (1 << 24))
    noisy = adj + unif * 0.01                                   # >= 0 everywhere

    # ---- per-row top-k mask: k max-and-kill reductions, mask built ONCE ------
    # noisy in [0, ~1.01]; scale to int and pack a reversed column index into
    # the low bits so every key in a row is unique (ties break on lowest col).
    low_bits = max((n - 1).bit_length(), 1)
    value_bits = 30 - low_bits                                  # keys stay < 2^31
    col_rev = (n - 1) - col
    vi = (noisy * jnp.float32(1 << value_bits)).astype(jnp.int32)
    keys = vi * jnp.int32(1 << low_bits) + col_rev

    work = keys
    kth = jnp.zeros((n, 1), jnp.int32)
    kill = jnp.int32(-(2 ** 31))
    for _ in range(k):                                          # k static & small
        kth = jnp.max(work, axis=1, keepdims=True)
        work = jnp.where(work == kth, kill, work)
    # kth is now the k-th largest key per row; keys are unique, so exactly k hit.
    mask = (keys >= kth).astype(jnp.float32)

    out_ref[...] = adj * mask


def graph_constructor_forward(idx, emb1, emb2, w1, b1, w2, b2, *, alpha, k, seed=0):
    n = idx.shape[0]
    num_nodes, dim = emb1.shape
    assert k <= n, "top-k k must be <= number of selected nodes"

    kernel = functools.partial(_graph_constructor_kernel,
                               alpha=float(alpha), k=int(k),
                               num_nodes=int(num_nodes), seed=int(seed))
    vmem = pl.BlockSpec(memory_space=pltpu.MemorySpace.VMEM)

    return pl.pallas_call(
        kernel,
        out_shape=jax.ShapeDtypeStruct((n, n), jnp.float32),
        in_specs=[vmem] * 7,
        out_specs=vmem,
    )(idx.astype(jnp.int32).reshape(n, 1),            # gather indices
      emb1.astype(jnp.float32), emb2.astype(jnp.float32),
      w1.astype(jnp.float32), b1.reshape(1, dim).astype(jnp.float32),
      w2.astype(jnp.float32), b2.reshape(1, dim).astype(jnp.float32))


if __name__ == "__main__":
    num_nodes, dim, topk, alpha = 16, 32, 4, 3.0

    key = jax.random.PRNGKey(0)
    k_e1, k_e2, k_w1, k_b1, k_w2, k_b2 = jax.random.split(key, 6)

    # Deterministic synthetic parameters (shapes match nn.Embedding / nn.Linear).
    emb1 = jax.random.normal(k_e1, (num_nodes, dim), jnp.float32)
    emb2 = jax.random.normal(k_e2, (num_nodes, dim), jnp.float32)
    bound = 1.0 / (dim ** 0.5)
    w1 = jax.random.uniform(k_w1, (dim, dim), jnp.float32, -bound, bound)
    b1 = jax.random.uniform(k_b1, (dim,), jnp.float32, -bound, bound)
    w2 = jax.random.uniform(k_w2, (dim, dim), jnp.float32, -bound, bound)
    b2 = jax.random.uniform(k_b2, (dim,), jnp.float32, -bound, bound)

    idx = jnp.arange(num_nodes, dtype=jnp.int32)

    adj = graph_constructor_forward(idx, emb1, emb2, w1, b1, w2, b2,
                                    alpha=alpha, k=topk, seed=0)
    jax.block_until_ready(adj)

    # Pure-JAX reference for the pre-mask adjacency (noise/top-k differ only in
    # which ties they pick, so we check shape, per-row sparsity and that every
    # surviving entry matches the reference value).
    e1 = emb1[idx]
    e2 = emb2[idx]
    v1 = jnp.tanh(alpha * (e1 @ w1.T + b1))
    v2 = jnp.tanh(alpha * (e2 @ w2.T + b2))
    a_ref = v1 @ v2.T - v2 @ v1.T
    adj_ref = jnp.maximum(jnp.tanh(alpha * a_ref), 0.0)

    assert adj.shape == (num_nodes, num_nodes)
    assert bool(jnp.all(jnp.isfinite(adj)))
    # at most k nonzeros per row (adj can be exactly 0 at selected positions)
    assert bool(jnp.all(jnp.sum(adj > 0, axis=1) <= topk))
    # surviving entries equal the unmasked relu(tanh(alpha*a)) reference
    assert bool(jnp.all(jnp.where(adj > 0, jnp.abs(adj - adj_ref) < 1e-5, True)))
    print("KERNEL_OK")
</pallas_src>

<mosaic_0001>
module attributes {stable_mosaic.version = 11 : i64} {
  func.func @_graph_constructor_kernel(%arg0: memref<16x1xi32, #tpu.memory_space<vmem>>, %arg1: memref<16x32xf32, #tpu.memory_space<vmem>>, %arg2: memref<16x32xf32, #tpu.memory_space<vmem>>, %arg3: memref<32x32xf32, #tpu.memory_space<vmem>>, %arg4: memref<1x32xf32, #tpu.memory_space<vmem>>, %arg5: memref<32x32xf32, #tpu.memory_space<vmem>>, %arg6: memref<1x32xf32, #tpu.memory_space<vmem>>, %arg7: memref<16x16xf32, #tpu.memory_space<vmem>>) attributes {dimension_semantics = [], scalar_prefetch = 0 : i64, scratch_operands = 0 : i64, tpu.core_type = #tpu.core_type<tc>} {
    %c0 = arith.constant 0 : index
    %c0_0 = arith.constant 0 : index
    %0 = vector.load %arg0[%c0, %c0_0] : memref<16x1xi32, #tpu.memory_space<vmem>>, vector<16x1xi32>
    %1 = tpu.iota {dimensions = array<i32: 1>} : vector<16x16xi32>
    %2 = vector.broadcast %0 : vector<16x1xi32> to vector<16x16xi32>
    %3 = arith.cmpi eq, %2, %1 : vector<16x16xi32>
    %4 = arith.extui %3 : vector<16x16xi1> to vector<16x16xi32>
    %5 = arith.sitofp %4 : vector<16x16xi32> to vector<16x16xf32>
    %c0_1 = arith.constant 0 : index
    %c0_2 = arith.constant 0 : index
    %6 = vector.load %arg1[%c0_1, %c0_2] : memref<16x32xf32, #tpu.memory_space<vmem>>, vector<16x32xf32>
    %cst = arith.constant dense<0.000000e+00> : vector<16x32xf32>
    %7 = tpu.matmul %5, %6, %cst {dimension_numbers = #tpu.dot_dimension_numbers<[1], [0], [0], [1], [0, 0, 1, 1], [], []>} : vector<16x16xf32>, vector<16x32xf32>, vector<16x32xf32> -> vector<16x32xf32>
    %c0_3 = arith.constant 0 : index
    %c0_4 = arith.constant 0 : index
    %8 = vector.load %arg2[%c0_3, %c0_4] : memref<16x32xf32, #tpu.memory_space<vmem>>, vector<16x32xf32>
    %cst_5 = arith.constant dense<0.000000e+00> : vector<16x32xf32>
    %9 = tpu.matmul %5, %8, %cst_5 {dimension_numbers = #tpu.dot_dimension_numbers<[1], [0], [0], [1], [0, 0, 1, 1], [], []>} : vector<16x16xf32>, vector<16x32xf32>, vector<16x32xf32> -> vector<16x32xf32>
    %c0_6 = arith.constant 0 : index
    %c0_7 = arith.constant 0 : index
    %10 = vector.load %arg3[%c0_6, %c0_7] : memref<32x32xf32, #tpu.memory_space<vmem>>, vector<32x32xf32>
    %cst_8 = arith.constant dense<0.000000e+00> : vector<16x32xf32>
    %11 = tpu.matmul %7, %10, %cst_8 {dimension_numbers = #tpu.dot_dimension_numbers<[1], [1], [0], [0], [0, 0, 1, 0], [], []>} : vector<16x32xf32>, vector<32x32xf32>, vector<16x32xf32> -> vector<16x32xf32>
    %c0_9 = arith.constant 0 : index
    %c0_10 = arith.constant 0 : index
    %12 = vector.load %arg4[%c0_9, %c0_10] : memref<1x32xf32, #tpu.memory_space<vmem>>, vector<1x32xf32>
    %13 = vector.broadcast %12 : vector<1x32xf32> to vector<16x32xf32>
    %14 = arith.addf %11, %13 : vector<16x32xf32>
    %cst_11 = arith.constant 3.000000e+00 : f32
    %15 = vector.broadcast %cst_11 : f32 to vector<16x32xf32>
    %16 = arith.mulf %15, %14 : vector<16x32xf32>
    %17 = math.tanh %16 : vector<16x32xf32>
    %c0_12 = arith.constant 0 : index
    %c0_13 = arith.constant 0 : index
    %18 = vector.load %arg5[%c0_12, %c0_13] : memref<32x32xf32, #tpu.memory_space<vmem>>, vector<32x32xf32>
    %cst_14 = arith.constant dense<0.000000e+00> : vector<16x32xf32>
    %19 = tpu.matmul %9, %18, %cst_14 {dimension_numbers = #tpu.dot_dimension_numbers<[1], [1], [0], [0], [0, 0, 1, 0], [], []>} : vector<16x32xf32>, vector<32x32xf32>, vector<16x32xf32> -> vector<16x32xf32>
    %c0_15 = arith.constant 0 : index
    %c0_16 = arith.constant 0 : index
    %20 = vector.load %arg6[%c0_15, %c0_16] : memref<1x32xf32, #tpu.memory_space<vmem>>, vector<1x32xf32>
    %21 = vector.broadcast %20 : vector<1x32xf32> to vector<16x32xf32>
    %22 = arith.addf %19, %21 : vector<16x32xf32>
    %cst_17 = arith.constant 3.000000e+00 : f32
    %23 = vector.broadcast %cst_17 : f32 to vector<16x32xf32>
    %24 = arith.mulf %23, %22 : vector<16x32xf32>
    %25 = math.tanh %24 : vector<16x32xf32>
    %cst_18 = arith.constant dense<0.000000e+00> : vector<16x16xf32>
    %26 = tpu.matmul %17, %25, %cst_18 {dimension_numbers = #tpu.dot_dimension_numbers<[1], [1], [0], [0], [0, 0, 1, 0], [], []>} : vector<16x32xf32>, vector<16x32xf32>, vector<16x16xf32> -> vector<16x16xf32>
    %27 = tpu.transpose %26, [1, 0] : vector<16x16xf32> -> vector<16x16xf32>
    %28 = arith.subf %26, %27 : vector<16x16xf32>
    %cst_19 = arith.constant 3.000000e+00 : f32
    %29 = vector.broadcast %cst_19 : f32 to vector<16x16xf32>
    %30 = arith.mulf %29, %28 : vector<16x16xf32>
    %31 = math.tanh %30 : vector<16x16xf32>
    %cst_20 = arith.constant 0.000000e+00 : f32
    %32 = vector.broadcast %cst_20 : f32 to vector<16x16xf32>
    %33 = arith.maximumf %31, %32 : vector<16x16xf32>
    %34 = tpu.iota {dimensions = array<i32: 0>} : vector<16x16xi32>
    %35 = tpu.iota {dimensions = array<i32: 1>} : vector<16x16xi32>
    %c16_i32 = arith.constant 16 : i32
    %36 = vector.broadcast %c16_i32 : i32 to vector<16x16xi32>
    %37 = arith.muli %34, %36 : vector<16x16xi32>
    %38 = arith.addi %37, %35 : vector<16x16xi32>
    %c-2048144789_i32 = arith.constant -2048144789 : i32
    %39 = vector.broadcast %c-2048144789_i32 : i32 to vector<16x16xi32>
    %40 = arith.xori %38, %39 : vector<16x16xi32>
    %c16_i32_21 = arith.constant 16 : i32
    %41 = vector.broadcast %c16_i32_21 : i32 to vector<16x16xi32>
    %42 = arith.shrui %40, %41 : vector<16x16xi32>
    %43 = arith.xori %40, %42 : vector<16x16xi32>
    %c2146121005_i32 = arith.constant 2146121005 : i32
    %44 = vector.broadcast %c2146121005_i32 : i32 to vector<16x16xi32>
    %45 = arith.muli %43, %44 : vector<16x16xi32>
    %c15_i32 = arith.constant 15 : i32
    %46 = vector.broadcast %c15_i32 : i32 to vector<16x16xi32>
    %47 = arith.shrui %45, %46 : vector<16x16xi32>
    %48 = arith.xori %45, %47 : vector<16x16xi32>
    %c-2073254261_i32 = arith.constant -2073254261 : i32
    %49 = vector.broadcast %c-2073254261_i32 : i32 to vector<16x16xi32>
    %50 = arith.muli %48, %49 : vector<16x16xi32>
    %c16_i32_22 = arith.constant 16 : i32
    %51 = vector.broadcast %c16_i32_22 : i32 to vector<16x16xi32>
    %52 = arith.shrui %50, %51 : vector<16x16xi32>
    %53 = arith.xori %50, %52 : vector<16x16xi32>
    %c8_i32 = arith.constant 8 : i32
    %54 = vector.broadcast %c8_i32 : i32 to vector<16x16xi32>
    %55 = arith.shrui %53, %54 : vector<16x16xi32>
    %56 = arith.sitofp %55 : vector<16x16xi32> to vector<16x16xf32>
    %cst_23 = arith.constant 5.96046448E-8 : f32
    %57 = vector.broadcast %cst_23 : f32 to vector<16x16xf32>
    %58 = arith.mulf %56, %57 : vector<16x16xf32>
    %cst_24 = arith.constant 0.00999999977 : f32
    %59 = vector.broadcast %cst_24 : f32 to vector<16x16xf32>
    %60 = arith.mulf %58, %59 : vector<16x16xf32>
    %61 = arith.addf %33, %60 : vector<16x16xf32>
    %c15_i32_25 = arith.constant 15 : i32
    %62 = vector.broadcast %c15_i32_25 : i32 to vector<16x16xi32>
    %63 = arith.subi %62, %35 : vector<16x16xi32>
    %cst_26 = arith.constant 0x4C800000 : f32
    %64 = vector.broadcast %cst_26 : f32 to vector<16x16xf32>
    %65 = arith.mulf %61, %64 : vector<16x16xf32>
    %66 = arith.fptosi %65 : vector<16x16xf32> to vector<16x16xi32>
    %c16_i32_27 = arith.constant 16 : i32
    %67 = vector.broadcast %c16_i32_27 : i32 to vector<16x16xi32>
    %68 = arith.muli %66, %67 : vector<16x16xi32>
    %69 = arith.addi %68, %63 : vector<16x16xi32>
    %cst_28 = arith.constant dense<-2147483648> : vector<16xi32>
    %70 = vector.multi_reduction <maxsi>, %69, %cst_28 [1] : vector<16x16xi32> to vector<16xi32>
    %71 = vector.shape_cast %70 : vector<16xi32> to vector<16x1xi32>
    %72 = vector.broadcast %71 : vector<16x1xi32> to vector<16x16xi32>
    %73 = arith.cmpi eq, %69, %72 : vector<16x16xi32>
    %c-2147483648_i32 = arith.constant -2147483648 : i32
    %74 = vector.broadcast %c-2147483648_i32 : i32 to vector<16x16xi32>
    %75 = arith.select %73, %74, %69 : vector<16x16xi1>, vector<16x16xi32>
    %cst_29 = arith.constant dense<-2147483648> : vector<16xi32>
    %76 = vector.multi_reduction <maxsi>, %75, %cst_29 [1] : vector<16x16xi32> to vector<16xi32>
    %77 = vector.shape_cast %76 : vector<16xi32> to vector<16x1xi32>
    %78 = vector.broadcast %77 : vector<16x1xi32> to vector<16x16xi32>
    %79 = arith.cmpi eq, %75, %78 : vector<16x16xi32>
    %c-2147483648_i32_30 = arith.constant -2147483648 : i32
    %80 = vector.broadcast %c-2147483648_i32_30 : i32 to vector<16x16xi32>
    %81 = arith.select %79, %80, %75 : vector<16x16xi1>, vector<16x16xi32>
    %cst_31 = arith.constant dense<-2147483648> : vector<16xi32>
    %82 = vector.multi_reduction <maxsi>, %81, %cst_31 [1] : vector<16x16xi32> to vector<16xi32>
    %83 = vector.shape_cast %82 : vector<16xi32> to vector<16x1xi32>
    %84 = vector.broadcast %83 : vector<16x1xi32> to vector<16x16xi32>
    %85 = arith.cmpi eq, %81, %84 : vector<16x16xi32>
    %c-2147483648_i32_32 = arith.constant -2147483648 : i32
    %86 = vector.broadcast %c-2147483648_i32_32 : i32 to vector<16x16xi32>
    %87 = arith.select %85, %86, %81 : vector<16x16xi1>, vector<16x16xi32>
    %cst_33 = arith.constant dense<-2147483648> : vector<16xi32>
    %88 = vector.multi_reduction <maxsi>, %87, %cst_33 [1] : vector<16x16xi32> to vector<16xi32>
    %89 = vector.shape_cast %88 : vector<16xi32> to vector<16x1xi32>
    %90 = vector.broadcast %89 : vector<16x1xi32> to vector<16x16xi32>
    %91 = arith.cmpi sge, %69, %90 : vector<16x16xi32>
    %92 = arith.extui %91 : vector<16x16xi1> to vector<16x16xi32>
    %93 = arith.sitofp %92 : vector<16x16xi32> to vector<16x16xf32>
    %94 = arith.mulf %33, %93 : vector<16x16xf32>
    %c0_34 = arith.constant 0 : index
    %c0_35 = arith.constant 0 : index
    %95 = vector.load %arg7[%c0_34, %c0_35] : memref<16x16xf32, #tpu.memory_space<vmem>>, vector<16x16xf32>
    tpu.vector_store %arg7[%c0_34, %c0_35], %94 {strides = array<i32>} : memref<16x16xf32, #tpu.memory_space<vmem>>, vector<16x16xf32>,
    return
  }
}

</mosaic_0001>

<llo_original>
// kernel: tpu_custom_call.1
$region0: #{tpu_custom_call.1}
  #allocation0 [shape = 'u32[]', space=smem, size = 0x4, offset = 0x4, fixed_abs, tag = 'smem constant byte address 0x4 - core index']
  #allocation1 [shape = 'u32[72,128]{1,0:T(1,128)}', space=vmem, size = 0x9000, scoped, tag = 'internal scratch']
  %s0 = inlined_call_operand.vmem [shape: s32[16,1], index: 0, kind: input, shape index: {}]
  %s1 = inlined_call_operand.vmem [shape: f32[16,32], index: 1, kind: input, shape index: {}]
  %s2 = inlined_call_operand.hbm [shape: f32[16,32], index: 2, kind: input, shape index: {}]
  %s3 = inlined_call_operand.hbm [shape: f32[32,32], index: 3, kind: input, shape index: {}]
  %s4 = inlined_call_operand.vmem [shape: f32[1,32], index: 4, kind: input, shape index: {}]
  %s5 = inlined_call_operand.hbm [shape: f32[32,32], index: 5, kind: input, shape index: {}]
  %s6 = inlined_call_operand.vmem [shape: f32[1,32], index: 6, kind: input, shape index: {}]
  %s7 = inlined_call_operand.hbm [shape: f32[16,16], index: 7, kind: output, shape index: {}]
  %s8 = sld [smem:[#allocation0]]
  $region50: #{tpu_custom_call.1} parent=0
    _
  %s10 = ssub.s32 1, %s8
  %s11 = scalar_select 0, %s10, %s8
  $region1: #{tpu_custom_call.1} parent=0
    #allocation2 [shape = 'u8[8192]{0}', space=vmem, size = 0x2000, scoped, tag = 'input window, operand 2, single buffered']
    #allocation3 [shape = 's32[1]{0}', space=sflag, size = 0x4, scoped, tag = 'scoped memory for tpu_custom_call.1']
    #allocation4 [shape = 's32[1]{0}', space=sflag, size = 0x4, scoped, tag = 'scoped memory for tpu_custom_call.1']
    #allocation5 [shape = 'u8[16384]{0}', space=vmem, size = 0x4000, scoped, tag = 'input window, operand 3, single buffered']
    #allocation6 [shape = 's32[1]{0}', space=sflag, size = 0x4, scoped, tag = 'scoped memory for tpu_custom_call.1']
    #allocation7 [shape = 'u8[16384]{0}', space=vmem, size = 0x4000, scoped, tag = 'input window, operand 5, single buffered']
    #allocation8 [shape = 'u8[8192]{0}', space=vmem, size = 0x2000, scoped, tag = 'output window, operand 0, single buffered']
    %12 = vsyncpa [#allocation3], 0
    %13 = vsyncpa [#allocation6], 0
    %14 = vsyncpa [#allocation4], 0
    // Predicated region
    $region2: #{tpu_custom_call.1} parent=1 // pred_check
      _
    $region3: #{tpu_custom_call.1} parent=1 // pred_check_branch
      %16 = sbr.rel (0) target = $region5
    $region4: #{tpu_custom_call.1} parent=1 // pred_region
      _
    $region5: #{tpu_custom_call.1} parent=1 // pred_fallthru
      _
    // Predicated region
    $region6: #{tpu_custom_call.1} parent=1 // pred_check
      _
    $region7: #{tpu_custom_call.1} parent=1 // pred_check_branch
      %18 = sbr.rel (0) target = $region9
    $region8: #{tpu_custom_call.1} parent=1 // pred_region
      _
    $region9: #{tpu_custom_call.1} parent=1 // pred_fallthru
      _
    // Predicated region
    $region10: #{tpu_custom_call.1} parent=1 // pred_check
      _
    $region11: #{tpu_custom_call.1} parent=1 // pred_check_branch
      %20 = sbr.rel (0) target = $region13
    $region12: #{tpu_custom_call.1} parent=1 // pred_region
      %22 = vsyncadd [#allocation3], 0
      %s23 = sshll.u32 %s2, 4
      %s24 = int_to_ptr.hbm [resolvable:$true] %s23
      %s25 = sshll.u32 [#allocation2], 4
      %s26 = int_to_ptr.vmem [resolvable:$true] %s25
      %31 = dma.hbm_to_vmem [thread:$0]  %s24, 256, %s26, [#allocation3], 128, 128, 8
    $region13: #{tpu_custom_call.1} parent=1 // pred_fallthru
      _
    // Predicated region
    $region14: #{tpu_custom_call.1} parent=1 // pred_check
      _
    $region15: #{tpu_custom_call.1} parent=1 // pred_check_branch
      %33 = sbr.rel (0) target = $region17
    $region16: #{tpu_custom_call.1} parent=1 // pred_region
      %35 = vsyncadd [#allocation6], 0
      %s36 = sshll.u32 %s3, 4
      %s37 = int_to_ptr.hbm [resolvable:$true] %s36
      %s38 = sshll.u32 [#allocation5], 4
      %s39 = int_to_ptr.vmem [resolvable:$true] %s38
      %44 = dma.hbm_to_vmem [thread:$0]  %s37, 512, %s39, [#allocation6], 128, 128, 8
    $region17: #{tpu_custom_call.1} parent=1 // pred_fallthru
      _
    // Predicated region
    $region18: #{tpu_custom_call.1} parent=1 // pred_check
      _
    $region19: #{tpu_custom_call.1} parent=1 // pred_check_branch
      %46 = sbr.rel (0) target = $region21
    $region20: #{tpu_custom_call.1} parent=1 // pred_region
      _
    $region21: #{tpu_custom_call.1} parent=1 // pred_fallthru
      _
    // Predicated region
    $region22: #{tpu_custom_call.1} parent=1 // pred_check
      _
    $region23: #{tpu_custom_call.1} parent=1 // pred_check_branch
      %48 = sbr.rel (0) target = $region25
    $region24: #{tpu_custom_call.1} parent=1 // pred_region
      %50 = vsyncadd [#allocation6], 0
      %s51 = sshll.u32 %s5, 4
      %s52 = int_to_ptr.hbm [resolvable:$true] %s51
      %s53 = sshll.u32 [#allocation7], 4
      %s54 = int_to_ptr.vmem [resolvable:$true] %s53
      %59 = dma.hbm_to_vmem [thread:$0]  %s52, 512, %s54, [#allocation6], 128, 128, 8
    $region25: #{tpu_custom_call.1} parent=1 // pred_fallthru
      _
    // Predicated region
    $region26: #{tpu_custom_call.1} parent=1 // pred_check
      _
    $region27: #{tpu_custom_call.1} parent=1 // pred_check_branch
      %61 = sbr.rel (0) target = $region29
    $region28: #{tpu_custom_call.1} parent=1 // pred_region
      _
    $region29: #{tpu_custom_call.1} parent=1 // pred_fallthru
      _
    // Predicated region
    $region30: #{tpu_custom_call.1} parent=1 // pred_check
      _
    $region31: #{tpu_custom_call.1} parent=1 // pred_check_branch
      %63 = sbr.rel (0) target = $region33
    $region32: #{tpu_custom_call.1} parent=1 // pred_region
      %65 = dma.done [#allocation3], 256
    $region33: #{tpu_custom_call.1} parent=1 // pred_fallthru
      _
    // Predicated region
    $region34: #{tpu_custom_call.1} parent=1 // pred_check
      _
    $region35: #{tpu_custom_call.1} parent=1 // pred_check_branch
      %67 = sbr.rel (0) target = $region37
    $region36: #{tpu_custom_call.1} parent=1 // pred_region
      %69 = dma.done [#allocation6], 512
    $region37: #{tpu_custom_call.1} parent=1 // pred_fallthru
      _
    // Predicated region
    $region38: #{tpu_custom_call.1} parent=1 // pred_check
      _
    $region39: #{tpu_custom_call.1} parent=1 // pred_check_branch
      %71 = sbr.rel (0) target = $region41
    $region40: #{tpu_custom_call.1} parent=1 // pred_region
      %73 = dma.done [#allocation6], 512
    $region41: #{tpu_custom_call.1} parent=1 // pred_fallthru
      _
    %v74 = vld [vmem:[%s0] sm:$0xff]
    %v75 = vld [vmem:[%s0 + $0x8] sm:$0xff]
    %v76 = vlaneseq
    %v77 = vand.u32 %v76, 127
    %78 = vset.pattern.permute.xlu0 0
    %79 = vperm.xlu0 %78, %v74
    %v80 = vpop.permute.xlu0 %79
    %81 = vset.pattern.permute.xlu0 0
    %82 = vperm.xlu0 %81, %v75
    %v83 = vpop.permute.xlu0 %82
    %vm84 = vcmp.eq.s32.totalorder %v80, %v77
    %vm85 = vcmp.eq.s32.totalorder %v83, %v77
    %v86 = vsel %vm84, 1, 0
    %v87 = vsel %vm85, 1, 0
    %v88 = vcvt.s32.f32 %v86
    %v89 = vcvt.s32.f32 %v87
    %v90 = vld [vmem:[%s1] sm:$0xff]
    %v91 = vld [vmem:[%s1 + $0x8] sm:$0xff]
    %vm92 = vcmask 130048
    %v94 = vsel %vm92, %v88, 0
    %v97 = vsel %vm92, %v89, 0
    %99 = vmatpush.msra.mxu0 0.0
    %100 = vmatpush.msra.mxu0 0.0
    %101 = vmatpush.msra.mxu0 0.0
    %102 = vmatpush.msra.mxu0 0.0
    %103 = vmatpush.msra.mxu0 0.0
    %104 = vmatpush.msra.mxu0 0.0
    %105 = vmatpush.msra.mxu0 0.0
    %106 = vmatpush.msra.mxu0 0.0
    %107 = vmatpush.msra.mxu0 0.0
    %108 = vmatpush.msra.mxu0 0.0
    %109 = vmatpush.msra.mxu0 0.0
    %110 = vmatpush.msra.mxu0 0.0
    %111 = vmatpush.msra.mxu0 0.0
    %112 = vmatpush.msra.mxu0 0.0
    %113 = vmatpush.msra.mxu0 %v91
    %114 = vmatpush.msra.mxu0 %v90
    %115 = vmatmul.f32.gmra.mxu0 %v94
    %v116 = vpop.f32.mrf.mxu0
    %v117 = vadd.f32 0.0, %v116
    %118 = vmatmul.f32.gmra.mxu0 %v97
    %v119 = vpop.f32.mrf.mxu0
    %v120 = vadd.f32 0.0, %v119
    %121 = vdwg.mxu0
    %v122 = vld [vmem:[#allocation2] sm:$0xff]
    %v123 = vld [vmem:[#allocation2 + $0x8] sm:$0xff]
    %124 = vmatpush.msra.mxu0 0.0
    %125 = vmatpush.msra.mxu0 0.0
    %126 = vmatpush.msra.mxu0 0.0
    %127 = vmatpush.msra.mxu0 0.0
    %128 = vmatpush.msra.mxu0 0.0
    %129 = vmatpush.msra.mxu0 0.0
    %130 = vmatpush.msra.mxu0 0.0
    %131 = vmatpush.msra.mxu0 0.0
    %132 = vmatpush.msra.mxu0 0.0
    %133 = vmatpush.msra.mxu0 0.0
    %134 = vmatpush.msra.mxu0 0.0
    %135 = vmatpush.msra.mxu0 0.0
    %136 = vmatpush.msra.mxu0 0.0
    %137 = vmatpush.msra.mxu0 0.0
    %138 = vmatpush.msra.mxu0 %v123
    %139 = vmatpush.msra.mxu0 %v122
    %140 = vmatmul.f32.gmra.mxu0 %v94
    %v141 = vpop.f32.mrf.mxu0
    %v142 = vadd.f32 0.0, %v141
    %143 = vmatmul.f32.gmra.mxu0 %v97
    %v144 = vpop.f32.mrf.mxu0
    %v145 = vadd.f32 0.0, %v144
    %146 = vdwg.mxu0
    %v147 = vld [vmem:[#allocation5] sm:$0xff]
    %v148 = vld [vmem:[#allocation5 + $0x8] sm:$0xff]
    %v149 = vld [vmem:[#allocation5 + $0x10] sm:$0xff]
    %v150 = vld [vmem:[#allocation5 + $0x18] sm:$0xff]
    %v151 = vld [vmem:[%s4] sm:$0x1]
    %v153 = vperm.slane %v151, 0
    %vm155 = vcmask 261120
    %v157 = vsel %vm155, %v117, 0
    %v160 = vsel %vm155, %v120, 0
    %v163 = vsel %vm155, %v147, 0
    %v166 = vsel %vm155, %v148, 0
    %v169 = vsel %vm155, %v149, 0
    %v172 = vsel %vm155, %v150, 0
    %174 = vmatpush.xpose.msra.mxu0 0.0
    %175 = vmatpush.xpose.msra.mxu0 0.0
    %176 = vmatpush.xpose.msra.mxu0 0.0
    %177 = vmatpush.xpose.msra.mxu0 0.0
    %178 = vmatpush.xpose.msra.mxu0 0.0
    %179 = vmatpush.xpose.msra.mxu0 0.0
    %180 = vmatpush.xpose.msra.mxu0 0.0
    %181 = vmatpush.xpose.msra.mxu0 0.0
    %182 = vmatpush.xpose.msra.mxu0 0.0
    %183 = vmatpush.xpose.msra.mxu0 0.0
    %184 = vmatpush.xpose.msra.mxu0 0.0
    %185 = vmatpush.xpose.msra.mxu0 0.0
    %186 = vmatpush.xpose.msra.mxu0 %v172
    %187 = vmatpush.xpose.msra.mxu0 %v169
    %188 = vmatpush.xpose.msra.mxu0 %v166
    %189 = vmatpush.xpose.msra.mxu0 %v163
    %190 = vmatmul.f32.gmra.mxu0 %v157
    %v191 = vpop.f32.mrf.mxu0
    %v192 = vadd.f32 %v153, %v191
    %193 = vmatmul.f32.gmra.mxu0 %v160
    %v194 = vpop.f32.mrf.mxu0
    %v195 = vadd.f32 %v153, %v194
    %196 = vdwg.mxu0
    %v197 = vmul.f32 %v192, 3.0
    %v198 = vmul.f32 %v195, 3.0
    %v199 = vtanh.pop %v197
    %v200 = vtanh.pop %v198
    %v201 = vld [vmem:[#allocation7] sm:$0xff]
    %v202 = vld [vmem:[#allocation7 + $0x8] sm:$0xff]
    %v203 = vld [vmem:[#allocation7 + $0x10] sm:$0xff]
    %v204 = vld [vmem:[#allocation7 + $0x18] sm:$0xff]
    %v205 = vld [vmem:[%s6] sm:$0x1]
    %v207 = vperm.slane %v205, 0
    %v210 = vsel %vm155, %v142, 0
    %v213 = vsel %vm155, %v145, 0
    %v216 = vsel %vm155, %v201, 0
    %v219 = vsel %vm155, %v202, 0
    %v222 = vsel %vm155, %v203, 0
    %v225 = vsel %vm155, %v204, 0
    %227 = vmatpush.xpose.msra.mxu0 0.0
    %228 = vmatpush.xpose.msra.mxu0 0.0
    %229 = vmatpush.xpose.msra.mxu0 0.0
    %230 = vmatpush.xpose.msra.mxu0 0.0
    %231 = vmatpush.xpose.msra.mxu0 0.0
    %232 = vmatpush.xpose.msra.mxu0 0.0
    %233 = vmatpush.xpose.msra.mxu0 0.0
    %234 = vmatpush.xpose.msra.mxu0 0.0
    %235 = vmatpush.xpose.msra.mxu0 0.0
    %236 = vmatpush.xpose.msra.mxu0 0.0
    %237 = vmatpush.xpose.msra.mxu0 0.0
    %238 = vmatpush.xpose.msra.mxu0 0.0
    %239 = vmatpush.xpose.msra.mxu0 %v225
    %240 = vmatpush.xpose.msra.mxu0 %v222
    %241 = vmatpush.xpose.msra.mxu0 %v219
    %242 = vmatpush.xpose.msra.mxu0 %v216
    %243 = vmatmul.f32.gmra.mxu0 %v210
    %v244 = vpop.f32.mrf.mxu0
    %v245 = vadd.f32 %v207, %v244
    %246 = vmatmul.f32.gmra.mxu0 %v213
    %v247 = vpop.f32.mrf.mxu0
    %v248 = vadd.f32 %v207, %v247
    %249 = vdwg.mxu0
    %v250 = vmul.f32 %v245, 3.0
    %v251 = vmul.f32 %v248, 3.0
    %v252 = vtanh.pop %v250
    %v253 = vtanh.pop %v251
    %v255 = vsel %vm155, %v199, 0
    %v258 = vsel %vm155, %v200, 0
    %v261 = vsel %vm155, %v252, 0
    %v264 = vsel %vm155, %v253, 0
    %266 = vmatpush.xpose.msra.mxu0 0.0
    %267 = vmatpush.xpose.msra.mxu0 0.0
    %268 = vmatpush.xpose.msra.mxu0 0.0
    %269 = vmatpush.xpose.msra.mxu0 0.0
    %270 = vmatpush.xpose.msra.mxu0 0.0
    %271 = vmatpush.xpose.msra.mxu0 0.0
    %272 = vmatpush.xpose.msra.mxu0 0.0
    %273 = vmatpush.xpose.msra.mxu0 0.0
    %274 = vmatpush.xpose.msra.mxu0 0.0
    %275 = vmatpush.xpose.msra.mxu0 0.0
    %276 = vmatpush.xpose.msra.mxu0 0.0
    %277 = vmatpush.xpose.msra.mxu0 0.0
    %278 = vmatpush.xpose.msra.mxu0 0.0
    %279 = vmatpush.xpose.msra.mxu0 0.0
    %280 = vmatpush.xpose.msra.mxu0 %v264
    %281 = vmatpush.xpose.msra.mxu0 %v261
    %282 = vmatmul.f32.gmra.mxu0 %v255
    %v283 = vpop.f32.mrf.mxu0
    %v284 = vadd.f32 0.0, %v283
    %285 = vmatmul.f32.gmra.mxu0 %v258
    %v286 = vpop.f32.mrf.mxu0
    %v287 = vadd.f32 0.0, %v286
    %288 = vdwg.mxu0
    %289 = vxpose.xlu0.b32.start [1/16] %v284, 128
    %290 = vxpose.xlu0.b32.cont [2/16] %v287, 128
    %291 = vxpose.xlu0.b32.cont [3/16] 0.0, 128
    %292 = vxpose.xlu0.b32.cont [4/16] 0.0, 128
    %293 = vxpose.xlu0.b32.cont [5/16] 0.0, 128
    %294 = vxpose.xlu0.b32.cont [6/16] 0.0, 128
    %295 = vxpose.xlu0.b32.cont [7/16] 0.0, 128
    %296 = vxpose.xlu0.b32.cont [8/16] 0.0, 128
    %297 = vxpose.xlu0.b32.cont [9/16] 0.0, 128
    %298 = vxpose.xlu0.b32.cont [10/16] 0.0, 128
    %299 = vxpose.xlu0.b32.cont [11/16] 0.0, 128
    %300 = vxpose.xlu0.b32.cont [12/16] 0.0, 128
    %301 = vxpose.xlu0.b32.cont [13/16] 0.0, 128
    %302 = vxpose.xlu0.b32.cont [14/16] 0.0, 128
    %303 = vxpose.xlu0.b32.cont [15/16] 0.0, 128
    %304 = vxpose.xlu0.b32.end [16/16] 0.0, 128
    %v305 = vpop.trf.xlu0
    %v306 = vpop.trf.xlu0
    %v307 = vpop.trf.xlu0
    %v308 = vpop.trf.xlu0
    %v309 = vpop.trf.xlu0
    %v310 = vpop.trf.xlu0
    %v311 = vpop.trf.xlu0
    %v312 = vpop.trf.xlu0
    %v313 = vpop.trf.xlu0
    %v314 = vpop.trf.xlu0
    %v315 = vpop.trf.xlu0
    %v316 = vpop.trf.xlu0
    %v317 = vpop.trf.xlu0
    %v318 = vpop.trf.xlu0
    %v319 = vpop.trf.xlu0
    %v320 = vpop.trf.xlu0
    %v321 = vsub.f32 %v284, %v305
    %v322 = vsub.f32 %v287, %v306
    %v323 = vmul.f32 %v321, 3.0
    %v324 = vmul.f32 %v322, 3.0
    %v325 = vtanh.pop %v323
    %v326 = vtanh.pop %v324
    %v327 = vmax.f32 %v325, 0.0
    %v328 = vmax.f32 %v326, 0.0
    %v329 = vlaneseq
    %v330 = vshrl.u32 %v329, 7
    %v331 = vadd.s32 %v330, 8
    %v332 = vmul.u32 %v330, 16
    %v333 = vmul.u32 %v331, 16
    %v334 = vadd.s32 %v332, %v77
    %v335 = vadd.s32 %v333, %v77
    %v336 = vxor.u32 %v334, 2246822507
    %v337 = vxor.u32 %v335, 2246822507
    %v338 = vshrl.u32 %v336, 16
    %v339 = vshrl.u32 %v337, 16
    %v340 = vxor.u32 %v336, %v338
    %v341 = vxor.u32 %v337, %v339
    %v342 = vmul.u32 %v340, 2146121005
    %v343 = vmul.u32 %v341, 2146121005
    %v344 = vshrl.u32 %v342, 15
    %v345 = vshrl.u32 %v343, 15
    %v346 = vxor.u32 %v342, %v344
    %v347 = vxor.u32 %v343, %v345
    %v348 = vmul.u32 %v346, 2221713035
    %v349 = vmul.u32 %v347, 2221713035
    %v350 = vshrl.u32 %v348, 16
    %v351 = vshrl.u32 %v349, 16
    %v352 = vxor.u32 %v348, %v350
    %v353 = vxor.u32 %v349, %v351
    %v354 = vshrl.u32 %v352, 8
    %v355 = vshrl.u32 %v353, 8
    %v356 = vcvt.s32.f32 %v354
    %v357 = vcvt.s32.f32 %v355
    %v358 = vmul.f32 %v356, 5.9604645e-08
    %v359 = vmul.f32 %v357, 5.9604645e-08
    %v360 = vmul.f32 %v358, 0.01
    %v361 = vmul.f32 %v359, 0.01
    %v362 = vadd.f32 %v327, %v360
    %v363 = vadd.f32 %v328, %v361
    %v364 = vsub.s32 15, %v77
    %v365 = vmul.f32 %v362, 67108864.0
    %v366 = vmul.f32 %v363, 67108864.0
    %v367 = vcvt.f32.s32.to.zero.pseudo %v365
    %v368 = vcvt.f32.s32.to.zero.pseudo %v366
    %v369 = vmul.u32 %v367, 16
    %v370 = vmul.u32 %v368, 16
    %v371 = vadd.s32 %v369, %v364
    %v372 = vadd.s32 %v370, %v364
    %v373 = vsel %vm92, %v371, 2147483648
    %v374 = vand.u32 %v373, 65535
    %v375 = vshra.s32 %v373, 16
    %v376 = vcvt.s32.f32 %v374
    %v377 = vcvt.s32.f32 %v375
    %378 = vmax.xlane.f32.xlu0 %v377
    %v379 = vpop.xlane.xlu0 %378
    %vm380 = vcmp.eq.f32.partialorder %v377, %v379
    %v381 = vsel %vm380, %v376, -inf
    %382 = vmax.xlane.f32.xlu0 %v381
    %v383 = vpop.xlane.xlu0 %382
    %v384 = vcvt.f32.s32 %v383
    %v385 = vcvt.f32.s32 %v379
    %v386 = vshll.u32 %v385, 16
    %v387 = vadd.s32 %v386, %v384
    %v388 = vsel %vm92, %v372, 2147483648
    %v389 = vand.u32 %v388, 65535
    %v390 = vshra.s32 %v388, 16
    %v391 = vcvt.s32.f32 %v389
    %v392 = vcvt.s32.f32 %v390
    %393 = vmax.xlane.f32.xlu0 %v392
    %v394 = vpop.xlane.xlu0 %393
    %vm395 = vcmp.eq.f32.partialorder %v392, %v394
    %v396 = vsel %vm395, %v391, -inf
    %397 = vmax.xlane.f32.xlu0 %v396
    %v398 = vpop.xlane.xlu0 %397
    %v399 = vcvt.f32.s32 %v398
    %v400 = vcvt.f32.s32 %v394
    %v401 = vshll.u32 %v400, 16
    %v402 = vadd.s32 %v401, %v399
    %vm403 = vcmp.eq.s32.totalorder %v371, %v387
    %vm404 = vcmp.eq.s32.totalorder %v372, %v402
    %v405 = vsel %vm403, 2147483648, %v371
    %v406 = vsel %vm404, 2147483648, %v372
    %v407 = vsel %vm92, %v405, 2147483648
    %v408 = vand.u32 %v407, 65535
    %v409 = vshra.s32 %v407, 16
    %v410 = vcvt.s32.f32 %v408
    %v411 = vcvt.s32.f32 %v409
    %412 = vmax.xlane.f32.xlu0 %v411
    %v413 = vpop.xlane.xlu0 %412
    %vm414 = vcmp.eq.f32.partialorder %v411, %v413
    %v415 = vsel %vm414, %v410, -inf
    %416 = vmax.xlane.f32.xlu0 %v415
    %v417 = vpop.xlane.xlu0 %416
    %v418 = vcvt.f32.s32 %v417
    %v419 = vcvt.f32.s32 %v413
    %v420 = vshll.u32 %v419, 16
    %v421 = vadd.s32 %v420, %v418
    %v422 = vsel %vm92, %v406, 2147483648
    %v423 = vand.u32 %v422, 65535
    %v424 = vshra.s32 %v422, 16
    %v425 = vcvt.s32.f32 %v423
    %v426 = vcvt.s32.f32 %v424
    %427 = vmax.xlane.f32.xlu0 %v426
    %v428 = vpop.xlane.xlu0 %427
    %vm429 = vcmp.eq.f32.partialorder %v426, %v428
    %v430 = vsel %vm429, %v425, -inf
    %431 = vmax.xlane.f32.xlu0 %v430
    %v432 = vpop.xlane.xlu0 %431
    %v433 = vcvt.f32.s32 %v432
    %v434 = vcvt.f32.s32 %v428
    %v435 = vshll.u32 %v434, 16
    %v436 = vadd.s32 %v435, %v433
    %vm437 = vcmp.eq.s32.totalorder %v405, %v421
    %vm438 = vcmp.eq.s32.totalorder %v406, %v436
    %v439 = vsel %vm437, 2147483648, %v405
    %v440 = vsel %vm438, 2147483648, %v406
    %v441 = vsel %vm92, %v439, 2147483648
    %v442 = vand.u32 %v441, 65535
    %v443 = vshra.s32 %v441, 16
    %v444 = vcvt.s32.f32 %v442
    %v445 = vcvt.s32.f32 %v443
    %446 = vmax.xlane.f32.xlu0 %v445
    %v447 = vpop.xlane.xlu0 %446
    %vm448 = vcmp.eq.f32.partialorder %v445, %v447
    %v449 = vsel %vm448, %v444, -inf
    %450 = vmax.xlane.f32.xlu0 %v449
    %v451 = vpop.xlane.xlu0 %450
    %v452 = vcvt.f32.s32 %v451
    %v453 = vcvt.f32.s32 %v447
    %v454 = vshll.u32 %v453, 16
    %v455 = vadd.s32 %v454, %v452
    %v456 = vsel %vm92, %v440, 2147483648
    %v457 = vand.u32 %v456, 65535
    %v458 = vshra.s32 %v456, 16
    %v459 = vcvt.s32.f32 %v457
    %v460 = vcvt.s32.f32 %v458
    %461 = vmax.xlane.f32.xlu0 %v460
    %v462 = vpop.xlane.xlu0 %461
    %vm463 = vcmp.eq.f32.partialorder %v460, %v462
    %v464 = vsel %vm463, %v459, -inf
    %465 = vmax.xlane.f32.xlu0 %v464
    %v466 = vpop.xlane.xlu0 %465
    %v467 = vcvt.f32.s32 %v466
    %v468 = vcvt.f32.s32 %v462
    %v469 = vshll.u32 %v468, 16
    %v470 = vadd.s32 %v469, %v467
    %vm471 = vcmp.eq.s32.totalorder %v439, %v455
    %vm472 = vcmp.eq.s32.totalorder %v440, %v470
    %v473 = vsel %vm471, 2147483648, %v439
    %v474 = vsel %vm472, 2147483648, %v440
    %v475 = vsel %vm92, %v473, 2147483648
    %v476 = vand.u32 %v475, 65535
    %v477 = vshra.s32 %v475, 16
    %v478 = vcvt.s32.f32 %v476
    %v479 = vcvt.s32.f32 %v477
    %480 = vmax.xlane.f32.xlu0 %v479
    %v481 = vpop.xlane.xlu0 %480
    %vm482 = vcmp.eq.f32.partialorder %v479, %v481
    %v483 = vsel %vm482, %v478, -inf
    %484 = vmax.xlane.f32.xlu0 %v483
    %v485 = vpop.xlane.xlu0 %484
    %v486 = vcvt.f32.s32 %v485
    %v487 = vcvt.f32.s32 %v481
    %v488 = vshll.u32 %v487, 16
    %v489 = vadd.s32 %v488, %v486
    %v490 = vsel %vm92, %v474, 2147483648
    %v491 = vand.u32 %v490, 65535
    %v492 = vshra.s32 %v490, 16
    %v493 = vcvt.s32.f32 %v491
    %v494 = vcvt.s32.f32 %v492
    %495 = vmax.xlane.f32.xlu0 %v494
    %v496 = vpop.xlane.xlu0 %495
    %vm497 = vcmp.eq.f32.partialorder %v494, %v496
    %v498 = vsel %vm497, %v493, -inf
    %499 = vmax.xlane.f32.xlu0 %v498
    %v500 = vpop.xlane.xlu0 %499
    %v501 = vcvt.f32.s32 %v500
    %v502 = vcvt.f32.s32 %v496
    %v503 = vshll.u32 %v502, 16
    %v504 = vadd.s32 %v503, %v501
    %vm505 = vcmp.ge.s32.totalorder %v371, %v489
    %vm506 = vcmp.ge.s32.totalorder %v372, %v504
    %v507 = vsel %vm505, 1, 0
    %v508 = vsel %vm506, 1, 0
    %v509 = vcvt.s32.f32 %v507
    %v510 = vcvt.s32.f32 %v508
    %v511 = vmul.f32 %v327, %v509
    %v512 = vmul.f32 %v328, %v510
    %513 = vst.msk [vmem:[#allocation8] sm:$0xff] %vm92, %v511
    %514 = vst.msk [vmem:[#allocation8 + $0x8] sm:$0xff] %vm92, %v512
    // Predicated region
    $region42: #{tpu_custom_call.1} parent=1 // pred_check
      _
    $region43: #{tpu_custom_call.1} parent=1 // pred_check_branch
      %516 = sbr.rel (0) target = $region45
    $region44: #{tpu_custom_call.1} parent=1 // pred_region
      %518 = vsyncadd [#allocation4], 0
      %s519 = sshll.u32 [#allocation8], 4
      %s520 = int_to_ptr.vmem [resolvable:$true] %s519
      %s521 = sshll.u32 %s7, 4
      %s522 = int_to_ptr.hbm [resolvable:$true] %s521
      %527 = dma.vmem_to_hbm [thread:$0]  %s520, 256, %s522, [#allocation4], 128, 128, 8
    $region45: #{tpu_custom_call.1} parent=1 // pred_fallthru
      _
    // Predicated region
    $region46: #{tpu_custom_call.1} parent=1 // pred_check
      _
    $region47: #{tpu_custom_call.1} parent=1 // pred_check_branch
      %529 = sbr.rel (0) target = $region49
    $region48: #{tpu_custom_call.1} parent=1 // pred_region
      %531 = dma.done [#allocation4], 256
    $region49: #{tpu_custom_call.1} parent=1 // pred_fallthru
      _
    %532 = vsyncpa [#allocation3], 1
    %533 = vsyncpa [#allocation6], 1
    %534 = vsyncpa [#allocation4], 1

</llo_original>
